<compile_context>
chip_gen: v6e
topology: v6e:2x2x1
jax: 0.10.0
libtpu: 0.0.40
codegen_flags: <defaults>
</compile_context>

<pallas_src>
import functools

import jax
import jax.numpy as jnp
from jax.experimental import pallas as pl
from jax.experimental.pallas import tpu as pltpu


def _attention_kernel(x_ref, wqk_ref, wv_ref, wp_ref, bp_ref, o_ref, *,
                      num_heads, head_dim, n_valid):
    Bb, Np, C = x_ref.shape
    H = num_heads
    dh = head_dim
    qd = H * dh
    ch = C // H
    M = Bb * Np

    # All batch-block tokens as one (M, C) bf16 slab.
    x2 = x_ref[...].reshape(M, C)

    # Full-width fused projections (f32 accumulation).  The softmax scale is
    # pre-folded into the Q half of wqk by the wrapper.
    qk = jnp.dot(x2, wqk_ref[...], preferred_element_type=jnp.float32)  # (M, 2qd)
    v = jnp.dot(x2, wv_ref[...], preferred_element_type=jnp.float32)    # (M, C)

    # Padded-key mask: computed once per grid step, reused by every head.
    key_valid = None
    if Np != n_valid:
        col = jax.lax.broadcasted_iota(jnp.int32, (Bb, Np, Np), 2)
        key_valid = col < n_valid

    acc = jnp.zeros((M, C), jnp.float32)
    # Small static unroll: per-head temporaries (s, p, ob) die each iteration;
    # the shared qk / v slabs above are what dominate the live set regardless.
    for h in range(H):
        q_h = qk[:, h * dh:(h + 1) * dh].reshape(Bb, Np, dh).astype(jnp.bfloat16)
        k_h = qk[:, qd + h * dh:qd + (h + 1) * dh].reshape(Bb, Np, dh).astype(jnp.bfloat16)
        v_h = v[:, h * ch:(h + 1) * ch].reshape(Bb, Np, ch).astype(jnp.bfloat16)

        # q @ k^T with the transpose folded into the contraction (no .T relayout).
        s = jax.lax.dot_general(
            q_h, k_h, (((2,), (2,)), ((0,), (0,))),
            preferred_element_type=jnp.float32)                 # (Bb, Np, Np)
        if key_valid is not None:
            s = jnp.where(key_valid, s, -jnp.inf)

        s = s - jnp.max(s, axis=-1, keepdims=True)
        p = jnp.exp(s)
        p = p * pl.reciprocal(jnp.sum(p, axis=-1, keepdims=True), approx=True)

        ob = jax.lax.dot_general(
            p.astype(jnp.bfloat16), v_h, (((2,), (1,)), ((0,), (0,))),
            preferred_element_type=jnp.float32)                 # (Bb, Np, ch)

        # Head concat folded into an accumulated full-width output projection.
        acc = acc + jnp.dot(ob.reshape(M, ch).astype(jnp.bfloat16), wp_ref[h],
                            preferred_element_type=jnp.float32)

    out = acc + bp_ref[...]                                     # (1, C) broadcast
    o_ref[...] = out.reshape(Bb, Np, C).astype(o_ref.dtype)


def _vmem_bytes_estimate(block_b, n_pad, C, qd, H):
    """Rough per-step VMEM footprint (tiles, weights, live intermediates)."""
    M = block_b * n_pad
    ch = C // H
    bf16, f32 = 2, 4
    io = 2 * M * C * bf16 + 2 * M * C * f32              # x + out tiles, double-buffered
    w = 2 * (C * 2 * qd + C * C + C * C + C) * bf16      # weights, double-buffered
    inter = (M * 2 * qd * (f32 + bf16)                    # qk (+ per-head bf16 slices)
             + M * C * (f32 + bf16)                       # v
             + 2 * block_b * n_pad * n_pad * f32          # scores + probs
             + M * C * f32 + M * ch * f32)                # acc, per-head ob
    return io + w + inter


def attention_forward(x, wqk, wv, wproj, bproj, *, num_heads, query_dim,
                      block_b=None):
    """x: (B, N, C).  Weights pre-transposed to (in, out)."""
    B, N, C = x.shape
    H = num_heads
    dh = query_dim // H
    ch = C // H
    scale = dh ** (-0.5)

    # Fold the softmax scale into the Q half of the fused QK weight; cast MXU
    # weights to bf16 (the kernel accumulates in f32).
    col_scale = jnp.concatenate(
        [jnp.full((query_dim,), scale, jnp.float32),
         jnp.ones((query_dim,), jnp.float32)])
    wqk_b = (wqk.astype(jnp.float32) * col_scale[None, :]).astype(jnp.bfloat16)
    wv_b = wv.astype(jnp.bfloat16)
    wp_b = wproj.reshape(H, ch, C).astype(jnp.bfloat16)    # head-major (H, ch, C)
    bp2 = bproj.reshape(1, C).astype(jnp.float32)

    # bf16 activations in HBM (halves input traffic); output stays f32.
    x_in = x.astype(jnp.bfloat16)

    # Pad tokens to a sublane multiple (8) so loads/stores are unmasked.
    n_pad = ((N + 7) // 8) * 8
    if n_pad != N:
        x_in = jnp.pad(x_in, ((0, 0), (0, n_pad - N), (0, 0)))

    # Batch block: target ~1024 fused rows per grid step, but keep >= 2 grid
    # steps so a dual-TensorCore chip (v7x) can shard the batch axis.
    if block_b is None:
        target_m = 1024
        block_b = max(1, target_m // n_pad)
        if 2 * block_b > B:
            block_b = max(1, (B + 1) // 2)
    # Pad B to a block multiple instead of shrinking block_b for awkward B.
    b_pad = ((B + block_b - 1) // block_b) * block_b
    if b_pad != B:
        x_in = jnp.pad(x_in, ((0, b_pad - B), (0, 0), (0, 0)))
    grid = (b_pad // block_b,)

    vmem_limit = int(min(48 * 2 ** 20,
                         max(32 * 2 ** 20,
                             2 * _vmem_bytes_estimate(block_b, n_pad, C,
                                                      query_dim, H))))

    kernel = functools.partial(_attention_kernel, num_heads=H, head_dim=dh,
                               n_valid=N)

    out = pl.pallas_call(
        kernel,
        out_shape=jax.ShapeDtypeStruct((b_pad, n_pad, C), jnp.float32),
        grid_spec=pltpu.PrefetchScalarGridSpec(
            num_scalar_prefetch=0,
            grid=grid,
            in_specs=[
                pl.BlockSpec((block_b, n_pad, C), lambda b: (b, 0, 0)),
                pl.BlockSpec((C, 2 * query_dim), lambda b: (0, 0)),
                pl.BlockSpec((C, C), lambda b: (0, 0)),
                pl.BlockSpec((H, ch, C), lambda b: (0, 0, 0)),
                pl.BlockSpec((1, C), lambda b: (0, 0)),
            ],
            out_specs=pl.BlockSpec((block_b, n_pad, C), lambda b: (b, 0, 0)),
        ),
        compiler_params=pltpu.CompilerParams(
            dimension_semantics=("parallel",),
            vmem_limit_bytes=vmem_limit),
    )(x_in, wqk_b, wv_b, wp_b, bp2)

    if b_pad != B or n_pad != N:
        out = out[:B, :N, :]
    return out


def _reference(x, wqk, wv, wproj, bproj, *, num_heads, query_dim):
    # Pure-JAX f32 reference mirroring the PyTorch forward exactly.
    B, N, C = x.shape
    dh = query_dim // num_heads
    ch = C // num_heads
    scale = dh ** (-0.5)
    qk = (x @ wqk).reshape(B, N, 2, num_heads, dh).transpose(2, 0, 3, 1, 4)
    q, k = qk[0], qk[1]                                              # (B,H,N,dh)
    v = (x @ wv).reshape(B, N, num_heads, ch).transpose(0, 2, 1, 3)  # (B,H,N,ch)
    attn = jnp.einsum("bhnd,bhmd->bhnm", q, k) * scale
    attn = jax.nn.softmax(attn, axis=-1)
    out = jnp.einsum("bhnm,bhmc->bhnc", attn, v)
    out = out.transpose(0, 2, 1, 3).reshape(B, N, C)
    return out @ wproj + bproj


if __name__ == "__main__":
    # Small, module-consistent shapes.
    B, N, C = 2, 8, 32
    num_heads = 4
    query_dim = 16

    key = jax.random.PRNGKey(0)
    kx, k1, k2, k3, k4 = jax.random.split(key, 5)

    x = jax.random.normal(kx, (B, N, C), dtype=jnp.float32)
    # Deterministic parameter init (Linear weights stored as (in, out)).
    wqk = jax.random.normal(k1, (C, 2 * query_dim), dtype=jnp.float32) * 0.1
    wv = jax.random.normal(k2, (C, C), dtype=jnp.float32) * 0.1
    wproj = jax.random.normal(k3, (C, C), dtype=jnp.float32) * 0.1
    bproj = jax.random.normal(k4, (C,), dtype=jnp.float32) * 0.1

    out = attention_forward(x, wqk, wv, wproj, bproj,
                            num_heads=num_heads, query_dim=query_dim)
    out = jax.block_until_ready(out)
    ref = _reference(x, wqk, wv, wproj, bproj,
                     num_heads=num_heads, query_dim=query_dim)
    assert out.shape == (B, N, C)
    # bf16 MXU operands (f32 accumulation) -> looser tolerance than pure f32.
    assert jnp.allclose(out, ref, atol=3e-2, rtol=3e-2), "mismatch vs reference"

    # Second check: B=3, N=7 exercises both batch-pad and token-pad/mask paths.
    B2, N2 = 3, 7
    x2 = jax.random.normal(kx, (B2, N2, C), dtype=jnp.float32)
    out2 = attention_forward(x2, wqk, wv, wproj, bproj,
                             num_heads=num_heads, query_dim=query_dim)
    out2 = jax.block_until_ready(out2)
    ref2 = _reference(x2, wqk, wv, wproj, bproj,
                      num_heads=num_heads, query_dim=query_dim)
    assert out2.shape == (B2, N2, C)
    assert jnp.allclose(out2, ref2, atol=3e-2, rtol=3e-2), "mismatch (padded B/N)"

    print("KERNEL_OK")
</pallas_src>

<mosaic_0001>
module attributes {stable_mosaic.version = 11 : i64} {
  func.func @_attention_kernel(%arg0: i32, %arg1: memref<1x8x32xbf16, #tpu.memory_space<vmem>>, %arg2: memref<32x32xbf16, #tpu.memory_space<vmem>>, %arg3: memref<32x32xbf16, #tpu.memory_space<vmem>>, %arg4: memref<4x8x32xbf16, #tpu.memory_space<vmem>>, %arg5: memref<1x32xf32, #tpu.memory_space<vmem>>, %arg6: memref<1x8x32xf32, #tpu.memory_space<vmem>>) attributes {dimension_semantics = [#tpu.dimension_semantics<parallel>], iteration_bounds = array<i64: 2>, scalar_prefetch = 0 : i64, scratch_operands = 0 : i64, tpu.core_type = #tpu.core_type<tc>, window_params = [{transform_indices = @transform_0, window_bounds = array<i64: 1, 8, 32>}, {pipeline_mode = #tpu.pipeline_mode<synchronous>, transform_indices = @transform_1, window_bounds = array<i64: 32, 32>}, {pipeline_mode = #tpu.pipeline_mode<synchronous>, transform_indices = @transform_2, window_bounds = array<i64: 32, 32>}, {pipeline_mode = #tpu.pipeline_mode<synchronous>, transform_indices = @transform_3, window_bounds = array<i64: 4, 8, 32>}, {pipeline_mode = #tpu.pipeline_mode<synchronous>, transform_indices = @transform_4, window_bounds = array<i64: 1, 32>}, {transform_indices = @transform_5, window_bounds = array<i64: 1, 8, 32>}]} {
    %c0 = arith.constant 0 : index
    %c0_0 = arith.constant 0 : index
    %c0_1 = arith.constant 0 : index
    %0 = vector.load %arg1[%c0, %c0_0, %c0_1] : memref<1x8x32xbf16, #tpu.memory_space<vmem>>, vector<1x8x32xbf16>
    %1 = vector.shape_cast %0 : vector<1x8x32xbf16> to vector<8x32xbf16>
    %c0_2 = arith.constant 0 : index
    %c0_3 = arith.constant 0 : index
    %2 = vector.load %arg2[%c0_2, %c0_3] : memref<32x32xbf16, #tpu.memory_space<vmem>>, vector<32x32xbf16>
    %cst = arith.constant dense<0.000000e+00> : vector<8x32xf32>
    %3 = tpu.matmul %1, %2, %cst {dimension_numbers = #tpu.dot_dimension_numbers<[1], [0], [0], [1], [0, 0, 1, 1], [], []>} : vector<8x32xbf16>, vector<32x32xbf16>, vector<8x32xf32> -> vector<8x32xf32>
    %c0_4 = arith.constant 0 : index
    %c0_5 = arith.constant 0 : index
    %4 = vector.load %arg3[%c0_4, %c0_5] : memref<32x32xbf16, #tpu.memory_space<vmem>>, vector<32x32xbf16>
    %cst_6 = arith.constant dense<0.000000e+00> : vector<8x32xf32>
    %5 = tpu.matmul %1, %4, %cst_6 {dimension_numbers = #tpu.dot_dimension_numbers<[1], [0], [0], [1], [0, 0, 1, 1], [], []>} : vector<8x32xbf16>, vector<32x32xbf16>, vector<8x32xf32> -> vector<8x32xf32>
    %cst_7 = arith.constant 0.000000e+00 : f32
    %6 = vector.broadcast %cst_7 : f32 to vector<8x32xf32>
    %7 = vector.extract_strided_slice %3 {offsets = [0, 0], sizes = [8, 4], strides = [1, 1]} : vector<8x32xf32> to vector<8x4xf32>
    %8 = vector.shape_cast %7 : vector<8x4xf32> to vector<1x8x4xf32>
    %9 = arith.truncf %8 : vector<1x8x4xf32> to vector<1x8x4xbf16>
    %10 = vector.extract_strided_slice %3 {offsets = [0, 16], sizes = [8, 4], strides = [1, 1]} : vector<8x32xf32> to vector<8x4xf32>
    %11 = vector.shape_cast %10 : vector<8x4xf32> to vector<1x8x4xf32>
    %12 = arith.truncf %11 : vector<1x8x4xf32> to vector<1x8x4xbf16>
    %13 = vector.extract_strided_slice %5 {offsets = [0, 0], sizes = [8, 8], strides = [1, 1]} : vector<8x32xf32> to vector<8x8xf32>
    %14 = vector.shape_cast %13 : vector<8x8xf32> to vector<1x8x8xf32>
    %15 = arith.truncf %14 : vector<1x8x8xf32> to vector<1x8x8xbf16>
    %cst_8 = arith.constant dense<0.000000e+00> : vector<1x8x8xf32>
    %16 = tpu.matmul %9, %12, %cst_8 {dimension_numbers = #tpu.dot_dimension_numbers<[2], [2], [1], [1], [0, 0, 0, 1, 1, 1], [0], [0]>} : vector<1x8x4xbf16>, vector<1x8x4xbf16>, vector<1x8x8xf32> -> vector<1x8x8xf32>
    %cst_9 = arith.constant dense<0xFF800000> : vector<1x8xf32>
    %17 = vector.multi_reduction <maximumf>, %16, %cst_9 [2] : vector<1x8x8xf32> to vector<1x8xf32>
    %18 = vector.shape_cast %17 : vector<1x8xf32> to vector<1x8x1xf32>
    %19 = vector.broadcast %18 : vector<1x8x1xf32> to vector<1x8x8xf32>
    %20 = arith.subf %16, %19 : vector<1x8x8xf32>
    %21 = math.exp %20 : vector<1x8x8xf32>
    %cst_10 = arith.constant dense<0.000000e+00> : vector<1x8xf32>
    %22 = vector.multi_reduction <add>, %21, %cst_10 [2] : vector<1x8x8xf32> to vector<1x8xf32>
    %23 = vector.shape_cast %22 : vector<1x8xf32> to vector<1x8x1xf32>
    %24 = tpu.reciprocal %23 {approx = true} : vector<1x8x1xf32> -> vector<1x8x1xf32>
    %25 = vector.broadcast %24 : vector<1x8x1xf32> to vector<1x8x8xf32>
    %26 = arith.mulf %21, %25 : vector<1x8x8xf32>
    %27 = arith.truncf %26 : vector<1x8x8xf32> to vector<1x8x8xbf16>
    %cst_11 = arith.constant dense<0.000000e+00> : vector<1x8x8xf32>
    %28 = tpu.matmul %27, %15, %cst_11 {dimension_numbers = #tpu.dot_dimension_numbers<[2], [1], [1], [2], [0, 0, 0, 1, 1, 2], [0], [0]>} : vector<1x8x8xbf16>, vector<1x8x8xbf16>, vector<1x8x8xf32> -> vector<1x8x8xf32>
    %29 = vector.shape_cast %28 : vector<1x8x8xf32> to vector<8x8xf32>
    %30 = arith.truncf %29 : vector<8x8xf32> to vector<8x8xbf16>
    %c0_12 = arith.constant 0 : index
    %c0_13 = arith.constant 0 : index
    %c0_14 = arith.constant 0 : index
    %31 = vector.load %arg4[%c0_12, %c0_13, %c0_14] : memref<4x8x32xbf16, #tpu.memory_space<vmem>>, vector<1x8x32xbf16>
    %32 = vector.shape_cast %31 : vector<1x8x32xbf16> to vector<8x32xbf16>
    %cst_15 = arith.constant dense<0.000000e+00> : vector<8x32xf32>
    %33 = tpu.matmul %30, %32, %cst_15 {dimension_numbers = #tpu.dot_dimension_numbers<[1], [0], [0], [1], [0, 0, 1, 1], [], []>} : vector<8x8xbf16>, vector<8x32xbf16>, vector<8x32xf32> -> vector<8x32xf32>
    %34 = arith.addf %6, %33 : vector<8x32xf32>
    %35 = vector.extract_strided_slice %3 {offsets = [0, 4], sizes = [8, 4], strides = [1, 1]} : vector<8x32xf32> to vector<8x4xf32>
    %36 = vector.shape_cast %35 : vector<8x4xf32> to vector<1x8x4xf32>
    %37 = arith.truncf %36 : vector<1x8x4xf32> to vector<1x8x4xbf16>
    %38 = vector.extract_strided_slice %3 {offsets = [0, 20], sizes = [8, 4], strides = [1, 1]} : vector<8x32xf32> to vector<8x4xf32>
    %39 = vector.shape_cast %38 : vector<8x4xf32> to vector<1x8x4xf32>
    %40 = arith.truncf %39 : vector<1x8x4xf32> to vector<1x8x4xbf16>
    %41 = vector.extract_strided_slice %5 {offsets = [0, 8], sizes = [8, 8], strides = [1, 1]} : vector<8x32xf32> to vector<8x8xf32>
    %42 = vector.shape_cast %41 : vector<8x8xf32> to vector<1x8x8xf32>
    %43 = arith.truncf %42 : vector<1x8x8xf32> to vector<1x8x8xbf16>
    %cst_16 = arith.constant dense<0.000000e+00> : vector<1x8x8xf32>
    %44 = tpu.matmul %37, %40, %cst_16 {dimension_numbers = #tpu.dot_dimension_numbers<[2], [2], [1], [1], [0, 0, 0, 1, 1, 1], [0], [0]>} : vector<1x8x4xbf16>, vector<1x8x4xbf16>, vector<1x8x8xf32> -> vector<1x8x8xf32>
    %cst_17 = arith.constant dense<0xFF800000> : vector<1x8xf32>
    %45 = vector.multi_reduction <maximumf>, %44, %cst_17 [2] : vector<1x8x8xf32> to vector<1x8xf32>
    %46 = vector.shape_cast %45 : vector<1x8xf32> to vector<1x8x1xf32>
    %47 = vector.broadcast %46 : vector<1x8x1xf32> to vector<1x8x8xf32>
    %48 = arith.subf %44, %47 : vector<1x8x8xf32>
    %49 = math.exp %48 : vector<1x8x8xf32>
    %cst_18 = arith.constant dense<0.000000e+00> : vector<1x8xf32>
    %50 = vector.multi_reduction <add>, %49, %cst_18 [2] : vector<1x8x8xf32> to vector<1x8xf32>
    %51 = vector.shape_cast %50 : vector<1x8xf32> to vector<1x8x1xf32>
    %52 = tpu.reciprocal %51 {approx = true} : vector<1x8x1xf32> -> vector<1x8x1xf32>
    %53 = vector.broadcast %52 : vector<1x8x1xf32> to vector<1x8x8xf32>
    %54 = arith.mulf %49, %53 : vector<1x8x8xf32>
    %55 = arith.truncf %54 : vector<1x8x8xf32> to vector<1x8x8xbf16>
    %cst_19 = arith.constant dense<0.000000e+00> : vector<1x8x8xf32>
    %56 = tpu.matmul %55, %43, %cst_19 {dimension_numbers = #tpu.dot_dimension_numbers<[2], [1], [1], [2], [0, 0, 0, 1, 1, 2], [0], [0]>} : vector<1x8x8xbf16>, vector<1x8x8xbf16>, vector<1x8x8xf32> -> vector<1x8x8xf32>
    %57 = vector.shape_cast %56 : vector<1x8x8xf32> to vector<8x8xf32>
    %58 = arith.truncf %57 : vector<8x8xf32> to vector<8x8xbf16>
    %c1 = arith.constant 1 : index
    %c0_20 = arith.constant 0 : index
    %c0_21 = arith.constant 0 : index
    %59 = vector.load %arg4[%c1, %c0_20, %c0_21] : memref<4x8x32xbf16, #tpu.memory_space<vmem>>, vector<1x8x32xbf16>
    %60 = vector.shape_cast %59 : vector<1x8x32xbf16> to vector<8x32xbf16>
    %cst_22 = arith.constant dense<0.000000e+00> : vector<8x32xf32>
    %61 = tpu.matmul %58, %60, %cst_22 {dimension_numbers = #tpu.dot_dimension_numbers<[1], [0], [0], [1], [0, 0, 1, 1], [], []>} : vector<8x8xbf16>, vector<8x32xbf16>, vector<8x32xf32> -> vector<8x32xf32>
    %62 = arith.addf %34, %61 : vector<8x32xf32>
    %63 = vector.extract_strided_slice %3 {offsets = [0, 8], sizes = [8, 4], strides = [1, 1]} : vector<8x32xf32> to vector<8x4xf32>
    %64 = vector.shape_cast %63 : vector<8x4xf32> to vector<1x8x4xf32>
    %65 = arith.truncf %64 : vector<1x8x4xf32> to vector<1x8x4xbf16>
    %66 = vector.extract_strided_slice %3 {offsets = [0, 24], sizes = [8, 4], strides = [1, 1]} : vector<8x32xf32> to vector<8x4xf32>
    %67 = vector.shape_cast %66 : vector<8x4xf32> to vector<1x8x4xf32>
    %68 = arith.truncf %67 : vector<1x8x4xf32> to vector<1x8x4xbf16>
    %69 = vector.extract_strided_slice %5 {offsets = [0, 16], sizes = [8, 8], strides = [1, 1]} : vector<8x32xf32> to vector<8x8xf32>
    %70 = vector.shape_cast %69 : vector<8x8xf32> to vector<1x8x8xf32>
    %71 = arith.truncf %70 : vector<1x8x8xf32> to vector<1x8x8xbf16>
    %cst_23 = arith.constant dense<0.000000e+00> : vector<1x8x8xf32>
    %72 = tpu.matmul %65, %68, %cst_23 {dimension_numbers = #tpu.dot_dimension_numbers<[2], [2], [1], [1], [0, 0, 0, 1, 1, 1], [0], [0]>} : vector<1x8x4xbf16>, vector<1x8x4xbf16>, vector<1x8x8xf32> -> vector<1x8x8xf32>
    %cst_24 = arith.constant dense<0xFF800000> : vector<1x8xf32>
    %73 = vector.multi_reduction <maximumf>, %72, %cst_24 [2] : vector<1x8x8xf32> to vector<1x8xf32>
    %74 = vector.shape_cast %73 : vector<1x8xf32> to vector<1x8x1xf32>
    %75 = vector.broadcast %74 : vector<1x8x1xf32> to vector<1x8x8xf32>
    %76 = arith.subf %72, %75 : vector<1x8x8xf32>
    %77 = math.exp %76 : vector<1x8x8xf32>
    %cst_25 = arith.constant dense<0.000000e+00> : vector<1x8xf32>
    %78 = vector.multi_reduction <add>, %77, %cst_25 [2] : vector<1x8x8xf32> to vector<1x8xf32>
    %79 = vector.shape_cast %78 : vector<1x8xf32> to vector<1x8x1xf32>
    %80 = tpu.reciprocal %79 {approx = true} : vector<1x8x1xf32> -> vector<1x8x1xf32>
    %81 = vector.broadcast %80 : vector<1x8x1xf32> to vector<1x8x8xf32>
    %82 = arith.mulf %77, %81 : vector<1x8x8xf32>
    %83 = arith.truncf %82 : vector<1x8x8xf32> to vector<1x8x8xbf16>
    %cst_26 = arith.constant dense<0.000000e+00> : vector<1x8x8xf32>
    %84 = tpu.matmul %83, %71, %cst_26 {dimension_numbers = #tpu.dot_dimension_numbers<[2], [1], [1], [2], [0, 0, 0, 1, 1, 2], [0], [0]>} : vector<1x8x8xbf16>, vector<1x8x8xbf16>, vector<1x8x8xf32> -> vector<1x8x8xf32>
    %85 = vector.shape_cast %84 : vector<1x8x8xf32> to vector<8x8xf32>
    %86 = arith.truncf %85 : vector<8x8xf32> to vector<8x8xbf16>
    %c2 = arith.constant 2 : index
    %c0_27 = arith.constant 0 : index
    %c0_28 = arith.constant 0 : index
    %87 = vector.load %arg4[%c2, %c0_27, %c0_28] : memref<4x8x32xbf16, #tpu.memory_space<vmem>>, vector<1x8x32xbf16>
    %88 = vector.shape_cast %87 : vector<1x8x32xbf16> to vector<8x32xbf16>
    %cst_29 = arith.constant dense<0.000000e+00> : vector<8x32xf32>
    %89 = tpu.matmul %86, %88, %cst_29 {dimension_numbers = #tpu.dot_dimension_numbers<[1], [0], [0], [1], [0, 0, 1, 1], [], []>} : vector<8x8xbf16>, vector<8x32xbf16>, vector<8x32xf32> -> vector<8x32xf32>
    %90 = arith.addf %62, %89 : vector<8x32xf32>
    %91 = vector.extract_strided_slice %3 {offsets = [0, 12], sizes = [8, 4], strides = [1, 1]} : vector<8x32xf32> to vector<8x4xf32>
    %92 = vector.shape_cast %91 : vector<8x4xf32> to vector<1x8x4xf32>
    %93 = arith.truncf %92 : vector<1x8x4xf32> to vector<1x8x4xbf16>
    %94 = vector.extract_strided_slice %3 {offsets = [0, 28], sizes = [8, 4], strides = [1, 1]} : vector<8x32xf32> to vector<8x4xf32>
    %95 = vector.shape_cast %94 : vector<8x4xf32> to vector<1x8x4xf32>
    %96 = arith.truncf %95 : vector<1x8x4xf32> to vector<1x8x4xbf16>
    %97 = vector.extract_strided_slice %5 {offsets = [0, 24], sizes = [8, 8], strides = [1, 1]} : vector<8x32xf32> to vector<8x8xf32>
    %98 = vector.shape_cast %97 : vector<8x8xf32> to vector<1x8x8xf32>
    %99 = arith.truncf %98 : vector<1x8x8xf32> to vector<1x8x8xbf16>
    %cst_30 = arith.constant dense<0.000000e+00> : vector<1x8x8xf32>
    %100 = tpu.matmul %93, %96, %cst_30 {dimension_numbers = #tpu.dot_dimension_numbers<[2], [2], [1], [1], [0, 0, 0, 1, 1, 1], [0], [0]>} : vector<1x8x4xbf16>, vector<1x8x4xbf16>, vector<1x8x8xf32> -> vector<1x8x8xf32>
    %cst_31 = arith.constant dense<0xFF800000> : vector<1x8xf32>
    %101 = vector.multi_reduction <maximumf>, %100, %cst_31 [2] : vector<1x8x8xf32> to vector<1x8xf32>
    %102 = vector.shape_cast %101 : vector<1x8xf32> to vector<1x8x1xf32>
    %103 = vector.broadcast %102 : vector<1x8x1xf32> to vector<1x8x8xf32>
    %104 = arith.subf %100, %103 : vector<1x8x8xf32>
    %105 = math.exp %104 : vector<1x8x8xf32>
    %cst_32 = arith.constant dense<0.000000e+00> : vector<1x8xf32>
    %106 = vector.multi_reduction <add>, %105, %cst_32 [2] : vector<1x8x8xf32> to vector<1x8xf32>
    %107 = vector.shape_cast %106 : vector<1x8xf32> to vector<1x8x1xf32>
    %108 = tpu.reciprocal %107 {approx = true} : vector<1x8x1xf32> -> vector<1x8x1xf32>
    %109 = vector.broadcast %108 : vector<1x8x1xf32> to vector<1x8x8xf32>
    %110 = arith.mulf %105, %109 : vector<1x8x8xf32>
    %111 = arith.truncf %110 : vector<1x8x8xf32> to vector<1x8x8xbf16>
    %cst_33 = arith.constant dense<0.000000e+00> : vector<1x8x8xf32>
    %112 = tpu.matmul %111, %99, %cst_33 {dimension_numbers = #tpu.dot_dimension_numbers<[2], [1], [1], [2], [0, 0, 0, 1, 1, 2], [0], [0]>} : vector<1x8x8xbf16>, vector<1x8x8xbf16>, vector<1x8x8xf32> -> vector<1x8x8xf32>
    %113 = vector.shape_cast %112 : vector<1x8x8xf32> to vector<8x8xf32>
    %114 = arith.truncf %113 : vector<8x8xf32> to vector<8x8xbf16>
    %c3 = arith.constant 3 : index
    %c0_34 = arith.constant 0 : index
    %c0_35 = arith.constant 0 : index
    %115 = vector.load %arg4[%c3, %c0_34, %c0_35] : memref<4x8x32xbf16, #tpu.memory_space<vmem>>, vector<1x8x32xbf16>
    %116 = vector.shape_cast %115 : vector<1x8x32xbf16> to vector<8x32xbf16>
    %cst_36 = arith.constant dense<0.000000e+00> : vector<8x32xf32>
    %117 = tpu.matmul %114, %116, %cst_36 {dimension_numbers = #tpu.dot_dimension_numbers<[1], [0], [0], [1], [0, 0, 1, 1], [], []>} : vector<8x8xbf16>, vector<8x32xbf16>, vector<8x32xf32> -> vector<8x32xf32>
    %118 = arith.addf %90, %117 : vector<8x32xf32>
    %c0_37 = arith.constant 0 : index
    %c0_38 = arith.constant 0 : index
    %119 = vector.load %arg5[%c0_37, %c0_38] : memref<1x32xf32, #tpu.memory_space<vmem>>, vector<1x32xf32>
    %120 = vector.broadcast %119 : vector<1x32xf32> to vector<8x32xf32>
    %121 = arith.addf %118, %120 : vector<8x32xf32>
    %122 = vector.shape_cast %121 : vector<8x32xf32> to vector<1x8x32xf32>
    %c0_39 = arith.constant 0 : index
    %c0_40 = arith.constant 0 : index
    %c0_41 = arith.constant 0 : index
    %123 = vector.load %arg6[%c0_39, %c0_40, %c0_41] : memref<1x8x32xf32, #tpu.memory_space<vmem>>, vector<1x8x32xf32>
    tpu.vector_store %arg6[%c0_39, %c0_40, %c0_41], %122 {strides = array<i32>} : memref<1x8x32xf32, #tpu.memory_space<vmem>>, vector<1x8x32xf32>,
    return
  }
  func.func @transform_0(%arg0: i32) -> (i32, i32, i32) {
    %c0_i32 = arith.constant 0 : i32
    %c0_i32_0 = arith.constant 0 : i32
    %c0_i32_1 = arith.constant 0 : i32
    return %arg0, %c0_i32, %c0_i32_0 : i32, i32, i32
  }
  func.func @transform_1(%arg0: i32) -> (i32, i32) {
    %c0_i32 = arith.constant 0 : i32
    %c0_i32_0 = arith.constant 0 : i32
    %c0_i32_1 = arith.constant 0 : i32
    return %c0_i32, %c0_i32_0 : i32, i32
  }
  func.func @transform_2(%arg0: i32) -> (i32, i32) {
    %c0_i32 = arith.constant 0 : i32
    %c0_i32_0 = arith.constant 0 : i32
    %c0_i32_1 = arith.constant 0 : i32
    return %c0_i32, %c0_i32_0 : i32, i32
  }
  func.func @transform_3(%arg0: i32) -> (i32, i32, i32) {
    %c0_i32 = arith.constant 0 : i32
    %c0_i32_0 = arith.constant 0 : i32
    %c0_i32_1 = arith.constant 0 : i32
    %c0_i32_2 = arith.constant 0 : i32
    return %c0_i32, %c0_i32_0, %c0_i32_1 : i32, i32, i32
  }
  func.func @transform_4(%arg0: i32) -> (i32, i32) {
    %c0_i32 = arith.constant 0 : i32
    %c0_i32_0 = arith.constant 0 : i32
    %c0_i32_1 = arith.constant 0 : i32
    return %c0_i32, %c0_i32_0 : i32, i32
  }
  func.func @transform_5(%arg0: i32) -> (i32, i32, i32) {
    %c0_i32 = arith.constant 0 : i32
    %c0_i32_0 = arith.constant 0 : i32
    %c0_i32_1 = arith.constant 0 : i32
    return %arg0, %c0_i32, %c0_i32_0 : i32, i32, i32
  }
}

</mosaic_0001>

<llo_original>
// kernel: tpu_custom_call.1
$region0: #{tpu_custom_call.1}
  #allocation0 [shape = 'u32[]', space=smem, size = 0x4, offset = 0x4, fixed_abs, tag = 'smem constant byte address 0x4 - core index']
  #allocation1 [shape = 'u32[144,128]{1,0:T(1,128)}', space=vmem, size = 0x12000, scoped, tag = 'internal scratch']
  %s0 = inlined_call_operand.hbm [shape: bf16[2,8,32], index: 0, kind: input, shape index: {}]
  %s1 = inlined_call_operand.hbm [shape: bf16[32,32], index: 1, kind: input, shape index: {}]
  %s2 = inlined_call_operand.hbm [shape: bf16[32,32], index: 2, kind: input, shape index: {}]
  %s3 = inlined_call_operand.hbm [shape: bf16[4,8,32], index: 3, kind: input, shape index: {}]
  %s4 = inlined_call_operand.vmem [shape: f32[1,32], index: 4, kind: input, shape index: {}]
  %s5 = inlined_call_operand.hbm [shape: f32[2,8,32], index: 5, kind: output, shape index: {}]
  %s6 = sld [smem:[#allocation0]]
  $region69: #{tpu_custom_call.1} parent=0
    _
  %s8 = ssub.s32 1, %s6
  %s9 = scalar_select 0, %s8, %s6
  $region1: #{tpu_custom_call.1} parent=0
    #allocation2 [shape = 'u8[4096]{0}', space=vmem, size = 0x1000, scoped, tag = 'input window, operand 0']
    #allocation3 [shape = 's32[2]{0}', space=sflag, size = 0x8, scoped, tag = 'scoped memory for tpu_custom_call.1']
    #allocation4 [shape = 's32[2]{0}', space=sflag, size = 0x8, scoped, tag = 'scoped memory for tpu_custom_call.1']
    #allocation5 [shape = 'u8[8192]{0}', space=vmem, size = 0x2000, scoped, tag = 'input window, operand 1, single buffered']
    #allocation6 [shape = 's32[1]{0}', space=sflag, size = 0x4, scoped, tag = 'scoped memory for tpu_custom_call.1']
    #allocation7 [shape = 'u8[8192]{0}', space=vmem, size = 0x2000, scoped, tag = 'input window, operand 2, single buffered']
    #allocation8 [shape = 'u8[8192]{0}', space=vmem, size = 0x2000, scoped, tag = 'input window, operand 3, single buffered']
    #allocation9 [shape = 's32[1]{0}', space=sflag, size = 0x4, scoped, tag = 'scoped memory for tpu_custom_call.1']
    #allocation10 [shape = 'u8[8192]{0}', space=vmem, size = 0x2000, scoped, tag = 'output window, operand 0']
    %10 = vsyncpa [#allocation3], 0
    %s11 = scalar_lea.sflag [#allocation3], 1
    %12 = vsyncpa %s11, 0
    %13 = vsyncpa [#allocation6], 0
    %14 = vsyncpa [#allocation9], 0
    %15 = vsyncpa [#allocation4], 0
    %s16 = scalar_lea.sflag [#allocation4], 1
    %17 = vsyncpa %s16, 0
    loop: start=0, step=1, limit=4
    $region2: #{tpu_custom_call.1} parent=1 // loop_pre_header
      _
    $region3: #{tpu_custom_call.1} parent=1 // loop_header
      %s19 = sphi 0, %s23
      %p20 = scmp.ge.s32.totalorder %s19, 4
      %s29 = sphi 0, %s31
      %s32 = sphi 0, %s29
      %s33 = sphi 0, %s32
      %s49 = sphi 0, %s33
      %s53 = sphi 0, %s53
      %s55 = sphi 0, %s53
      %s56 = sphi 0, %s55
      %s70 = sphi 0, %s56
      %s74 = sphi 0, %s74
      %s76 = sphi 0, %s74
      %s77 = sphi 0, %s76
      %s91 = sphi 0, %s77
      %s95 = sphi 0, %s95
      %s97 = sphi 0, %s95
      %s98 = sphi 0, %s97
      %s112 = sphi 0, %s98
      %s116 = sphi 0, %s116
      %s118 = sphi 0, %s116
      %s119 = sphi 0, %s118
      %s133 = sphi 0, %s119
      %s139 = sphi 0, %s141
      %s142 = sphi 0, %s139
      %s143 = sphi 0, %s142
      %s159 = sphi 0, %s143
    $region4: #{tpu_custom_call.1} parent=1 // loop_header_branch
      %22 = sbr.rel (%p20) target = $region8
    $region5: #{tpu_custom_call.1} parent=1 // loop_body
      %s24 = ssub.s32 %s19, 1
      %s25 = ssub.s32 %s19, 2
      %s26 = sadd.s32 %s19, 1
      %s27 = ssub.s32 %s19, %s26
      %p28 = scmp.eq.s32.totalorder %s27, 0
      %s30 = sadd.s32 %s29, 1
      %s31 = scalar_select %p28, %s29, %s30
      %p34 = pneg %p28
      %p35 = scmp.eq.s32.totalorder %s19, 1
      %p36 = por %p34, %p35
      %p37 = scmp.ne.s32.totalorder %s29, %s32
      %p38 = scmp.eq.s32.totalorder %s19, 0
      %p39 = por %p37, %p38
      %p40 = scmp.ne.s32.totalorder %s29, %s32
      %p41 = scmp.eq.s32.totalorder %s24, 1
      %p42 = por %p40, %p41
      %p43 = scmp.ne.s32.totalorder %s32, %s33
      %p44 = scmp.eq.s32.totalorder %s24, 0
      %p45 = por %p43, %p44
      %p46 = scmp.ne.s32.totalorder %s32, %s33
      %p47 = scmp.eq.s32.totalorder %s25, 1
      %p48 = por %p46, %p47
      %p50 = scmp.ne.s32.totalorder %s33, %s49
      %p51 = scmp.eq.s32.totalorder %s25, 0
      %p52 = por %p50, %p51
      %s54 = sadd.s32 %s53, 1
      %p57 = scmp.eq.s32.totalorder %s19, 1
      %p58 = scmp.ne.s32.totalorder %s53, %s55
      %p59 = scmp.eq.s32.totalorder %s19, 0
      %p60 = por %p58, %p59
      %p61 = scmp.ne.s32.totalorder %s53, %s55
      %p62 = scmp.eq.s32.totalorder %s24, 1
      %p63 = por %p61, %p62
      %p64 = scmp.ne.s32.totalorder %s55, %s56
      %p65 = scmp.eq.s32.totalorder %s24, 0
      %p66 = por %p64, %p65
      %p67 = scmp.ne.s32.totalorder %s55, %s56
      %p68 = scmp.eq.s32.totalorder %s25, 1
      %p69 = por %p67, %p68
      %p71 = scmp.ne.s32.totalorder %s56, %s70
      %p72 = scmp.eq.s32.totalorder %s25, 0
      %p73 = por %p71, %p72
      %s75 = sadd.s32 %s74, 1
      %p78 = scmp.eq.s32.totalorder %s19, 1
      %p79 = scmp.ne.s32.totalorder %s74, %s76
      %p80 = scmp.eq.s32.totalorder %s19, 0
      %p81 = por %p79, %p80
      %p82 = scmp.ne.s32.totalorder %s74, %s76
      %p83 = scmp.eq.s32.totalorder %s24, 1
      %p84 = por %p82, %p83
      %p85 = scmp.ne.s32.totalorder %s76, %s77
      %p86 = scmp.eq.s32.totalorder %s24, 0
      %p87 = por %p85, %p86
      %p88 = scmp.ne.s32.totalorder %s76, %s77
      %p89 = scmp.eq.s32.totalorder %s25, 1
      %p90 = por %p88, %p89
      %p92 = scmp.ne.s32.totalorder %s77, %s91
      %p93 = scmp.eq.s32.totalorder %s25, 0
      %p94 = por %p92, %p93
      %s96 = sadd.s32 %s95, 1
      %p99 = scmp.eq.s32.totalorder %s19, 1
      %p100 = scmp.ne.s32.totalorder %s95, %s97
      %p101 = scmp.eq.s32.totalorder %s19, 0
      %p102 = por %p100, %p101
      %p103 = scmp.ne.s32.totalorder %s95, %s97
      %p104 = scmp.eq.s32.totalorder %s24, 1
      %p105 = por %p103, %p104
      %p106 = scmp.ne.s32.totalorder %s97, %s98
      %p107 = scmp.eq.s32.totalorder %s24, 0
      %p108 = por %p106, %p107
      %p109 = scmp.ne.s32.totalorder %s97, %s98
      %p110 = scmp.eq.s32.totalorder %s25, 1
      %p111 = por %p109, %p110
      %p113 = scmp.ne.s32.totalorder %s98, %s112
      %p114 = scmp.eq.s32.totalorder %s25, 0
      %p115 = por %p113, %p114
      %s117 = sadd.s32 %s116, 1
      %p120 = scmp.eq.s32.totalorder %s19, 1
      %p121 = scmp.ne.s32.totalorder %s116, %s118
      %p122 = scmp.eq.s32.totalorder %s19, 0
      %p123 = por %p121, %p122
      %p124 = scmp.ne.s32.totalorder %s116, %s118
      %p125 = scmp.eq.s32.totalorder %s24, 1
      %p126 = por %p124, %p125
      %p127 = scmp.ne.s32.totalorder %s118, %s119
      %p128 = scmp.eq.s32.totalorder %s24, 0
      %p129 = por %p127, %p128
      %p130 = scmp.ne.s32.totalorder %s118, %s119
      %p131 = scmp.eq.s32.totalorder %s25, 1
      %p132 = por %p130, %p131
      %p134 = scmp.ne.s32.totalorder %s119, %s133
      %p135 = scmp.eq.s32.totalorder %s25, 0
      %p136 = por %p134, %p135
      %s137 = ssub.s32 %s19, %s26
      %p138 = scmp.eq.s32.totalorder %s137, 0
      %s140 = sadd.s32 %s139, 1
      %s141 = scalar_select %p138, %s139, %s140
      %p144 = pneg %p138
      %p145 = scmp.eq.s32.totalorder %s19, 1
      %p146 = por %p144, %p145
      %p147 = scmp.ne.s32.totalorder %s139, %s142
      %p148 = scmp.eq.s32.totalorder %s19, 0
      %p149 = por %p147, %p148
      %p150 = scmp.ne.s32.totalorder %s139, %s142
      %p151 = scmp.eq.s32.totalorder %s24, 1
      %p152 = por %p150, %p151
      %p153 = scmp.ne.s32.totalorder %s142, %s143
      %p154 = scmp.eq.s32.totalorder %s24, 0
      %p155 = por %p153, %p154
      %p156 = scmp.ne.s32.totalorder %s142, %s143
      %p157 = scmp.eq.s32.totalorder %s25, 1
      %p158 = por %p156, %p157
      %p160 = scmp.ne.s32.totalorder %s143, %s159
      %p161 = scmp.eq.s32.totalorder %s25, 0
      %p162 = por %p160, %p161
      %p163 = scmp.le.s32.totalorder 1, %s19
      %p164 = scmp.lt.s32.totalorder %s19, 3
      %p165 = pnand %p163, %p164
      %p166 = pneg %p165
      // Predicated region
      $region9: #{tpu_custom_call.1} parent=5 // pred_check
        _
      $region10: #{tpu_custom_call.1} parent=5 // pred_check_branch
        %168 = sbr.rel (%p165) target = $region12
      $region11: #{tpu_custom_call.1} parent=5 // pred_region
        %s169 = ssub.s32 %s19, 1
        // Predicated region
        $region13: #{tpu_custom_call.1} parent=11 // pred_check
          %p170 = pneg %p66
        $region14: #{tpu_custom_call.1} parent=11 // pred_check_branch
          %172 = sbr.rel (%p170) target = $region16
        $region15: #{tpu_custom_call.1} parent=11 // pred_region
          %s174 = ssub.s32 256, 256
          %175 = vsyncadd [#allocation6], %s174
          %s176 = sshll.u32 [#allocation5], 4
          %s177 = int_to_ptr.vmem [resolvable:$true] %s176
          %182 = dma.hbm_to_vmem [thread:$0]  %s1, 256, %s177, [#allocation6], 64, 64, 4
        $region16: #{tpu_custom_call.1} parent=11 // pred_fallthru
          _
        // Predicated region
        $region17: #{tpu_custom_call.1} parent=11 // pred_check
          %p183 = pneg %p87
        $region18: #{tpu_custom_call.1} parent=11 // pred_check_branch
          %185 = sbr.rel (%p183) target = $region20
        $region19: #{tpu_custom_call.1} parent=11 // pred_region
          %s187 = ssub.s32 256, 256
          %188 = vsyncadd [#allocation6], %s187
          %s189 = sshll.u32 [#allocation7], 4
          %s190 = int_to_ptr.vmem [resolvable:$true] %s189
          %195 = dma.hbm_to_vmem [thread:$0]  %s2, 256, %s190, [#allocation6], 64, 64, 4
        $region20: #{tpu_custom_call.1} parent=11 // pred_fallthru
          _
        // Predicated region
        $region21: #{tpu_custom_call.1} parent=11 // pred_check
          %p196 = pneg %p108
        $region22: #{tpu_custom_call.1} parent=11 // pred_check_branch
          %198 = sbr.rel (%p196) target = $region24
        $region23: #{tpu_custom_call.1} parent=11 // pred_region
          %s200 = ssub.s32 256, 256
          %201 = vsyncadd [#allocation9], %s200
          %s202 = sshll.u32 [#allocation8], 4
          %s203 = int_to_ptr.vmem [resolvable:$true] %s202
          %208 = dma.hbm_to_vmem [thread:$0]  %s3, 256, %s203, [#allocation9], 64, 64, 4
        $region24: #{tpu_custom_call.1} parent=11 // pred_fallthru
          _
        // Predicated region
        $region25: #{tpu_custom_call.1} parent=11 // pred_check
          %p209 = pneg %p129
        $region26: #{tpu_custom_call.1} parent=11 // pred_check_branch
          %211 = sbr.rel (%p209) target = $region28
        $region27: #{tpu_custom_call.1} parent=11 // pred_region
          _
        $region28: #{tpu_custom_call.1} parent=11 // pred_fallthru
          _
      $region12: #{tpu_custom_call.1} parent=5 // pred_fallthru
        _
      %p212 = scmp.lt.s32.totalorder %s19, 2
      // Predicated region
      $region29: #{tpu_custom_call.1} parent=5 // pred_check
        %p213 = pneg %p212
      $region30: #{tpu_custom_call.1} parent=5 // pred_check_branch
        %215 = sbr.rel (%p213) target = $region32
      $region31: #{tpu_custom_call.1} parent=5 // pred_region
        // Predicated region
        $region33: #{tpu_custom_call.1} parent=31 // pred_check
          %p216 = pneg %p39
        $region34: #{tpu_custom_call.1} parent=31 // pred_check_branch
          %218 = sbr.rel (%p216) target = $region36
        $region35: #{tpu_custom_call.1} parent=31 // pred_region
          %s219 = sand.u32 %s29, 1
          %s220 = scalar_lea.sflag [#allocation3], %s219
          %s221 = sand.u32 %s29, 1
          %s222 = smul.addr %s221, 4
          %s223 = scalar_lea.vmem [#allocation2], %s222
          %s225 = ssub.s32 64, 64
          %226 = vsyncadd %s220, %s225
          %s227 = smul.addr %s19, 64
          %s228 = scalar_lea.hbm %s0, %s227
          %s230 = sshll.u32 %s223, 4
          %s231 = int_to_ptr.vmem [resolvable:$true] %s230
          %233 = dma.hbm_to_vmem [thread:$0]  %s228, 64, %s231, %s220
        $region36: #{tpu_custom_call.1} parent=31 // pred_fallthru
          _
      $region32: #{tpu_custom_call.1} parent=5 // pred_fallthru
        _
      %p234 = scmp.le.s32.totalorder 1, %s19
      %p235 = scmp.lt.s32.totalorder %s19, 3
      %p236 = pnand %p234, %p235
      %p237 = pneg %p236
      // Predicated region
      $region37: #{tpu_custom_call.1} parent=5 // pred_check
        _
      $region38: #{tpu_custom_call.1} parent=5 // pred_check_branch
        %239 = sbr.rel (%p236) target = $region40
      $region39: #{tpu_custom_call.1} parent=5 // pred_region
        %s240 = ssub.s32 %s19, 1
        %s241 = sand.u32 %s32, 1
        %s242 = scalar_lea.sflag [#allocation3], %s241
        %s243 = sand.u32 %s32, 1
        %s244 = smul.addr %s243, 4
        %s245 = scalar_lea.vmem [#allocation2], %s244
        // Predicated region
        $region41: #{tpu_custom_call.1} parent=39 // pred_check
          %p246 = pneg %p45
        $region42: #{tpu_custom_call.1} parent=39 // pred_check_branch
          %248 = sbr.rel (%p246) target = $region44
        $region43: #{tpu_custom_call.1} parent=39 // pred_region
          %249 = dma.done %s242, 64
        $region44: #{tpu_custom_call.1} parent=39 // pred_fallthru
          _
        // Predicated region
        $region45: #{tpu_custom_call.1} parent=39 // pred_check
          %p250 = pneg %p66
        $region46: #{tpu_custom_call.1} parent=39 // pred_check_branch
          %252 = sbr.rel (%p250) target = $region48
        $region47: #{tpu_custom_call.1} parent=39 // pred_region
          %253 = dma.done [#allocation6], 256
        $region48: #{tpu_custom_call.1} parent=39 // pred_fallthru
          _
        // Predicated region
        $region49: #{tpu_custom_call.1} parent=39 // pred_check
          %p254 = pneg %p87
        $region50: #{tpu_custom_call.1} parent=39 // pred_check_branch
          %256 = sbr.rel (%p254) target = $region52
        $region51: #{tpu_custom_call.1} parent=39 // pred_region
          %257 = dma.done [#allocation6], 256
        $region52: #{tpu_custom_call.1} parent=39 // pred_fallthru
          _
        // Predicated region
        $region53: #{tpu_custom_call.1} parent=39 // pred_check
          %p258 = pneg %p108
        $region54: #{tpu_custom_call.1} parent=39 // pred_check_branch
          %260 = sbr.rel (%p258) target = $region56
        $region55: #{tpu_custom_call.1} parent=39 // pred_region
          %261 = dma.done [#allocation9], 256
        $region56: #{tpu_custom_call.1} parent=39 // pred_fallthru
          _
        %s262 = sand.u32 %s32, 1
        %s263 = scalar_lea.sflag [#allocation3], %s262
        %s264 = sand.u32 %s32, 1
        %s265 = smul.addr %s264, 4
        %s266 = scalar_lea.vmem [#allocation2], %s265
        %p267 = pneg %p45
        %p268 = pneg %p42
        %p269 = pneg %p66
        %p270 = pneg %p63
        %p271 = pneg %p87
        %p272 = pneg %p84
        %p273 = pneg %p108
        %p274 = pneg %p105
        %p275 = pneg %p129
        %p276 = pneg %p126
        %p277 = pneg %p155
        %p278 = pneg %p152
        %s279 = sand.u32 %s142, 1
        %s280 = scalar_lea.sflag [#allocation4], %s279
        %s281 = sand.u32 %s142, 1
        %s282 = smul.addr %s281, 8
        %s283 = scalar_lea.vmem [#allocation10], %s282
        %v285 = vld [vmem:[%s245] sm:$0xf]
        %v286 = vld [vmem:[#allocation5] sm:$0xf]
        %v287 = vld [vmem:[#allocation5 + $0x4] sm:$0xf]
        %v288 = vld [vmem:[#allocation5 + $0x8] sm:$0xf]
        %v289 = vld [vmem:[#allocation5 + $0xc] sm:$0xf]
        %v294 = vunpack.c.l.b16 %v286
        %v295 = vunpack.c.l.b16 %v287
        %v296 = vunpack.c.l.b16 %v288
        %v297 = vunpack.c.l.b16 %v289
        %v298 = vpack.c.b16 %v295, %v294
        %v299 = vpack.c.b16 %v297, %v296
        %vm302 = vcmask 261120
        %v304 = vsel %vm302, %v285, 0
        %306 = vmatprep.subr.bf16.mxu0 0
        %307 = vmatpush1.bf16.msra.mxu0 0
        %308 = vmatprep.subr.bf16.mxu0 0
        %309 = vmatpush1.bf16.msra.mxu0 0
        %310 = vmatprep.subr.bf16.mxu0 0
        %311 = vmatpush1.bf16.msra.mxu0 0
        %312 = vmatprep.subr.bf16.mxu0 0
        %313 = vmatpush1.bf16.msra.mxu0 0
        %314 = vmatprep.subr.bf16.mxu0 0
        %315 = vmatpush1.bf16.msra.mxu0 0
        %316 = vmatprep.subr.bf16.mxu0 0
        %317 = vmatpush1.bf16.msra.mxu0 0
        %318 = vmatprep.subr.bf16.mxu0 0
        %319 = vmatpush1.bf16.msra.mxu0 %v299
        %320 = vmatprep.subr.bf16.mxu0 0
        %321 = vmatpush1.bf16.msra.mxu0 %v298
        %322 = vmatprep.subr.bf16.mxu0 0
        %323 = vmatpush2.bf16.msra.mxu0 0
        %324 = vmatprep.subr.bf16.mxu0 0
        %325 = vmatpush2.bf16.msra.mxu0 0
        %326 = vmatprep.subr.bf16.mxu0 0
        %327 = vmatpush2.bf16.msra.mxu0 0
        %328 = vmatprep.subr.bf16.mxu0 0
        %329 = vmatpush2.bf16.msra.mxu0 0
        %330 = vmatprep.subr.bf16.mxu0 0
        %331 = vmatpush2.bf16.msra.mxu0 0
        %332 = vmatprep.subr.bf16.mxu0 0
        %333 = vmatpush2.bf16.msra.mxu0 0
        %334 = vmatprep.subr.bf16.mxu0 0
        %335 = vmatpush2.bf16.msra.mxu0 0
        %336 = vmatprep.subr.bf16.mxu0 0
        %337 = vmatpush2.bf16.msra.mxu0 0
        %338 = vmatprep.mubr.bf16.mxu0 0
        %339 = vmatmul.mubr.bf16.gmra.mxu0 %v304
        %v340 = vpop.f32.mrf.mxu0
        %v341 = vadd.f32 0.0, %v340
        %v342 = vpop.f32.mrf.mxu0
        %v343 = vpop.f32.mrf.mxu0
        %v344 = vpop.f32.mrf.mxu0
        %345 = vdwg.mxu0
        %v346 = vld [vmem:[#allocation7] sm:$0xf]
        %v347 = vld [vmem:[#allocation7 + $0x4] sm:$0xf]
        %v348 = vld [vmem:[#allocation7 + $0x8] sm:$0xf]
        %v349 = vld [vmem:[#allocation7 + $0xc] sm:$0xf]
        %v354 = vunpack.c.l.b16 %v346
        %v355 = vunpack.c.l.b16 %v347
        %v356 = vunpack.c.l.b16 %v348
        %v357 = vunpack.c.l.b16 %v349
        %v358 = vpack.c.b16 %v355, %v354
        %v359 = vpack.c.b16 %v357, %v356
        %362 = vmatprep.subr.bf16.mxu0 0
        %363 = vmatpush1.bf16.msra.mxu0 0
        %364 = vmatprep.subr.bf16.mxu0 0
        %365 = vmatpush1.bf16.msra.mxu0 0
        %366 = vmatprep.subr.bf16.mxu0 0
        %367 = vmatpush1.bf16.msra.mxu0 0
        %368 = vmatprep.subr.bf16.mxu0 0
        %369 = vmatpush1.bf16.msra.mxu0 0
        %370 = vmatprep.subr.bf16.mxu0 0
        %371 = vmatpush1.bf16.msra.mxu0 0
        %372 = vmatprep.subr.bf16.mxu0 0
        %373 = vmatpush1.bf16.msra.mxu0 0
        %374 = vmatprep.subr.bf16.mxu0 0
        %375 = vmatpush1.bf16.msra.mxu0 %v359
        %376 = vmatprep.subr.bf16.mxu0 0
        %377 = vmatpush1.bf16.msra.mxu0 %v358
        %378 = vmatprep.subr.bf16.mxu0 0
        %379 = vmatpush2.bf16.msra.mxu0 0
        %380 = vmatprep.subr.bf16.mxu0 0
        %381 = vmatpush2.bf16.msra.mxu0 0
        %382 = vmatprep.subr.bf16.mxu0 0
        %383 = vmatpush2.bf16.msra.mxu0 0
        %384 = vmatprep.subr.bf16.mxu0 0
        %385 = vmatpush2.bf16.msra.mxu0 0
        %386 = vmatprep.subr.bf16.mxu0 0
        %387 = vmatpush2.bf16.msra.mxu0 0
        %388 = vmatprep.subr.bf16.mxu0 0
        %389 = vmatpush2.bf16.msra.mxu0 0
        %390 = vmatprep.subr.bf16.mxu0 0
        %391 = vmatpush2.bf16.msra.mxu0 0
        %392 = vmatprep.subr.bf16.mxu0 0
        %393 = vmatpush2.bf16.msra.mxu0 0
        %394 = vmatprep.mubr.bf16.mxu0 0
        %395 = vmatmul.mubr.bf16.gmra.mxu0 %v304
        %v396 = vpop.f32.mrf.mxu0
        %v397 = vadd.f32 0.0, %v396
        %v398 = vpop.f32.mrf.mxu0
        %v399 = vpop.f32.mrf.mxu0
        %v400 = vpop.f32.mrf.mxu0
        %401 = vdwg.mxu0
        %v402 = vpack.c.bf16 %v341, %v341
        %v403 = vpack.c.bf16 %v397, %v397
        %405 = vrot.lane.b32.xlu0 %v402, 112
        %v406 = vpop.permute.xlu0 %405
        %vm407 = vcmask 31744
        %v409 = vsel %vm407, %v402, 0
        %v412 = vsel %vm407, %v406, 0
        %414 = vmatprep.subr.bf16.mxu0 0
        %415 = vmatpush1.bf16.xpose.msra.mxu0 0
        %416 = vmatprep.subr.bf16.mxu0 0
        %417 = vmatpush1.bf16.xpose.msra.mxu0 0
        %418 = vmatprep.subr.bf16.mxu0 0
        %419 = vmatpush1.bf16.xpose.msra.mxu0 0
        %420 = vmatprep.subr.bf16.mxu0 0
        %421 = vmatpush1.bf16.xpose.msra.mxu0 0
        %422 = vmatprep.subr.bf16.mxu0 0
        %423 = vmatpush1.bf16.xpose.msra.mxu0 0
        %424 = vmatprep.subr.bf16.mxu0 0
        %425 = vmatpush1.bf16.xpose.msra.mxu0 0
        %426 = vmatprep.subr.bf16.mxu0 0
        %427 = vmatpush1.bf16.xpose.msra.mxu0 0
        %428 = vmatprep.subr.bf16.mxu0 0
        %429 = vmatpush1.bf16.xpose.msra.mxu0 %v412
        %430 = vmatprep.subr.bf16.mxu0 0
        %431 = vmatpush2.bf16.xpose.msra.mxu0 0
        %432 = vmatprep.subr.bf16.mxu0 0
        %433 = vmatpush2.bf16.xpose.msra.mxu0 0
        %434 = vmatprep.subr.bf16.mxu0 0
        %435 = vmatpush2.bf16.xpose.msra.mxu0 0
        %436 = vmatprep.subr.bf16.mxu0 0
        %437 = vmatpush2.bf16.xpose.msra.mxu0 0
        %438 = vmatprep.subr.bf16.mxu0 0
        %439 = vmatpush2.bf16.xpose.msra.mxu0 0
        %440 = vmatprep.subr.bf16.mxu0 0
        %441 = vmatpush2.bf16.xpose.msra.mxu0 0
        %442 = vmatprep.subr.bf16.mxu0 0
        %443 = vmatpush2.bf16.xpose.msra.mxu0 0
        %444 = vmatprep.subr.bf16.mxu0 0
        %445 = vmatpush2.bf16.xpose.msra.mxu0 0
        %446 = vmatprep.mubr.bf16.mxu0 0
        %447 = vmatmul.mubr.bf16.gmra.mxu0 %v409
        %v448 = vpop.f32.mrf.mxu0
        %v449 = vadd.f32 0.0, %v448
        %v450 = vpop.f32.mrf.mxu0
        %v451 = vpop.f32.mrf.mxu0
        %v452 = vpop.f32.mrf.mxu0
        %453 = vdwg.mxu0
        %vm454 = vcmask 64512
        %v455 = vsel %vm454, %v449, -inf
        %456 = vmax.xlane.f32.xlu0 %v455
        %v457 = vpop.xlane.xlu0 %456
        %v458 = vsub.f32 %v449, %v457
        %v459 = vmul.f32 %v458, 1.442695
        %v460 = vpow.pop %v459
        %v461 = vsel %vm454, %v460, 0.0
        %462 = vadd.xlane.f32.xlu0 %v461
        %v463 = vpop.xlane.xlu0 %462
        %v464 = vrcp.pop %v463
        %v465 = vmul.f32 %v460, %v464
        %v466 = vpack.c.bf16 %v465, %v465
        %v468 = vsel %vm454, %v466, 0
        %vm470 = vcmask 1043456
        %v472 = vsel %vm470, %v403, 0
        %474 = vmatprep.subr.bf16.mxu0 0
        %475 = vmatpush1.bf16.msra.mxu0 0
        %476 = vmatprep.subr.bf16.mxu0 0
        %477 = vmatpush1.bf16.msra.mxu0 0
        %478 = vmatprep.subr.bf16.mxu0 0
        %479 = vmatpush1.bf16.msra.mxu0 0
        %480 = vmatprep.subr.bf16.mxu0 0
        %481 = vmatpush1.bf16.msra.mxu0 0
        %482 = vmatprep.subr.bf16.mxu0 0
        %483 = vmatpush1.bf16.msra.mxu0 0
        %484 = vmatprep.subr.bf16.mxu0 0
        %485 = vmatpush1.bf16.msra.mxu0 0
        %486 = vmatprep.subr.bf16.mxu0 0
        %487 = vmatpush1.bf16.msra.mxu0 0
        %488 = vmatprep.subr.bf16.mxu0 0
        %489 = vmatpush1.bf16.msra.mxu0 %v472
        %490 = vmatprep.subr.bf16.mxu0 0
        %491 = vmatpush2.bf16.msra.mxu0 0
        %492 = vmatprep.subr.bf16.mxu0 0
        %493 = vmatpush2.bf16.msra.mxu0 0
        %494 = vmatprep.subr.bf16.mxu0 0
        %495 = vmatpush2.bf16.msra.mxu0 0
        %496 = vmatprep.subr.bf16.mxu0 0
        %497 = vmatpush2.bf16.msra.mxu0 0
        %498 = vmatprep.subr.bf16.mxu0 0
        %499 = vmatpush2.bf16.msra.mxu0 0
        %500 = vmatprep.subr.bf16.mxu0 0
        %501 = vmatpush2.bf16.msra.mxu0 0
        %502 = vmatprep.subr.bf16.mxu0 0
        %503 = vmatpush2.bf16.msra.mxu0 0
        %504 = vmatprep.subr.bf16.mxu0 0
        %505 = vmatpush2.bf16.msra.mxu0 0
        %506 = vmatprep.mubr.bf16.mxu0 0
        %507 = vmatmul.mubr.bf16.gmra.mxu0 %v468
        %v508 = vpop.f32.mrf.mxu0
        %v509 = vadd.f32 0.0, %v508
        %v510 = vpop.f32.mrf.mxu0
        %v511 = vpop.f32.mrf.mxu0
        %v512 = vpop.f32.mrf.mxu0
        %513 = vdwg.mxu0
        %v514 = vpack.c.bf16 %v509, %v509
        %v515 = vld [vmem:[#allocation8] sm:$0xf]
        %516 = vrot.lane.b32.xlu0 %v402, 124
        %v517 = vpop.permute.xlu0 %516
        %518 = vrot.lane.b32.xlu0 %v402, 108
        %v519 = vpop.permute.xlu0 %518
        %v521 = vsel %vm407, %v517, 0
        %v524 = vsel %vm407, %v519, 0
        %526 = vmatprep.subr.bf16.mxu0 0
        %527 = vmatpush1.bf16.xpose.msra.mxu0 0
        %528 = vmatprep.subr.bf16.mxu0 0
        %529 = vmatpush1.bf16.xpose.msra.mxu0 0
        %530 = vmatprep.subr.bf16.mxu0 0
        %531 = vmatpush1.bf16.xpose.msra.mxu0 0
        %532 = vmatprep.subr.bf16.mxu0 0
        %533 = vmatpush1.bf16.xpose.msra.mxu0 0
        %534 = vmatprep.subr.bf16.mxu0 0
        %535 = vmatpush1.bf16.xpose.msra.mxu0 0
        %536 = vmatprep.subr.bf16.mxu0 0
        %537 = vmatpush1.bf16.xpose.msra.mxu0 0
        %538 = vmatprep.subr.bf16.mxu0 0
        %539 = vmatpush1.bf16.xpose.msra.mxu0 0
        %540 = vmatprep.subr.bf16.mxu0 0
        %541 = vmatpush1.bf16.xpose.msra.mxu0 %v524
        %542 = vmatprep.subr.bf16.mxu0 0
        %543 = vmatpush2.bf16.xpose.msra.mxu0 0
        %544 = vmatprep.subr.bf16.mxu0 0
        %545 = vmatpush2.bf16.xpose.msra.mxu0 0
        %546 = vmatprep.subr.bf16.mxu0 0
        %547 = vmatpush2.bf16.xpose.msra.mxu0 0
        %548 = vmatprep.subr.bf16.mxu0 0
        %549 = vmatpush2.bf16.xpose.msra.mxu0 0
        %550 = vmatprep.subr.bf16.mxu0 0
        %551 = vmatpush2.bf16.xpose.msra.mxu0 0
        %552 = vmatprep.subr.bf16.mxu0 0
        %553 = vmatpush2.bf16.xpose.msra.mxu0 0
        %554 = vmatprep.subr.bf16.mxu0 0
        %555 = vmatpush2.bf16.xpose.msra.mxu0 0
        %556 = vmatprep.subr.bf16.mxu0 0
        %557 = vmatpush2.bf16.xpose.msra.mxu0 0
        %558 = vmatprep.mubr.bf16.mxu0 0
        %559 = vmatmul.mubr.bf16.gmra.mxu0 %v521
        %v560 = vpop.f32.mrf.mxu0
        %v561 = vadd.f32 0.0, %v560
        %v562 = vpop.f32.mrf.mxu0
        %v563 = vpop.f32.mrf.mxu0
        %v564 = vpop.f32.mrf.mxu0
        %565 = vdwg.mxu0
        %v566 = vsel %vm454, %v561, -inf
        %567 = vmax.xlane.f32.xlu0 %v566
        %v568 = vpop.xlane.xlu0 %567
        %v569 = vsub.f32 %v561, %v568
        %v570 = vmul.f32 %v569, 1.442695
        %v571 = vpow.pop %v570
        %v572 = vsel %vm454, %v571, 0.0
        %573 = vadd.xlane.f32.xlu0 %v572
        %v574 = vpop.xlane.xlu0 %573
        %v575 = vrcp.pop %v574
        %v576 = vmul.f32 %v571, %v575
        %v577 = vpack.c.bf16 %v576, %v576
        %579 = vrot.lane.b32.xlu0 %v403, 120
        %v580 = vpop.permute.xlu0 %579
        %v582 = vsel %vm454, %v577, 0
        %v585 = vsel %vm470, %v580, 0
        %587 = vmatprep.subr.bf16.mxu0 0
        %588 = vmatpush1.bf16.msra.mxu0 0
        %589 = vmatprep.subr.bf16.mxu0 0
        %590 = vmatpush1.bf16.msra.mxu0 0
        %591 = vmatprep.subr.bf16.mxu0 0
        %592 = vmatpush1.bf16.msra.mxu0 0
        %593 = vmatprep.subr.bf16.mxu0 0
        %594 = vmatpush1.bf16.msra.mxu0 0
        %595 = vmatprep.subr.bf16.mxu0 0
        %596 = vmatpush1.bf16.msra.mxu0 0
        %597 = vmatprep.subr.bf16.mxu0 0
        %598 = vmatpush1.bf16.msra.mxu0 0
        %599 = vmatprep.subr.bf16.mxu0 0
        %600 = vmatpush1.bf16.msra.mxu0 0
        %601 = vmatprep.subr.bf16.mxu0 0
        %602 = vmatpush1.bf16.msra.mxu0 %v585
        %603 = vmatprep.subr.bf16.mxu0 0
        %604 = vmatpush2.bf16.msra.mxu0 0
        %605 = vmatprep.subr.bf16.mxu0 0
        %606 = vmatpush2.bf16.msra.mxu0 0
        %607 = vmatprep.subr.bf16.mxu0 0
        %608 = vmatpush2.bf16.msra.mxu0 0
        %609 = vmatprep.subr.bf16.mxu0 0
        %610 = vmatpush2.bf16.msra.mxu0 0
        %611 = vmatprep.subr.bf16.mxu0 0
        %612 = vmatpush2.bf16.msra.mxu0 0
        %613 = vmatprep.subr.bf16.mxu0 0
        %614 = vmatpush2.bf16.msra.mxu0 0
        %615 = vmatprep.subr.bf16.mxu0 0
        %616 = vmatpush2.bf16.msra.mxu0 0
        %617 = vmatprep.subr.bf16.mxu0 0
        %618 = vmatpush2.bf16.msra.mxu0 0
        %619 = vmatprep.mubr.bf16.mxu0 0
        %620 = vmatmul.mubr.bf16.gmra.mxu0 %v582
        %v621 = vpop.f32.mrf.mxu0
        %v622 = vadd.f32 0.0, %v621
        %v623 = vpop.f32.mrf.mxu0
        %v624 = vpop.f32.mrf.mxu0
        %v625 = vpop.f32.mrf.mxu0
        %626 = vdwg.mxu0
        %v627 = vpack.c.bf16 %v622, %v622
        %s628 = scalar_lea.vmem [#allocation8], 4
        %v629 = vld [vmem:[%s628] sm:$0xf]
        %v631 = vsel %vm454, %v627, 0
        %v634 = vsel %vm470, %v629, 0
        %636 = vmatprep.subr.bf16.mxu0 0
        %637 = vmatpush1.bf16.msra.mxu0 0
        %638 = vmatprep.subr.bf16.mxu0 0
        %639 = vmatpush1.bf16.msra.mxu0 0
        %640 = vmatprep.subr.bf16.mxu0 0
        %641 = vmatpush1.bf16.msra.mxu0 0
        %642 = vmatprep.subr.bf16.mxu0 0
        %643 = vmatpush1.bf16.msra.mxu0 0
        %644 = vmatprep.subr.bf16.mxu0 0
        %645 = vmatpush1.bf16.msra.mxu0 0
        %646 = vmatprep.subr.bf16.mxu0 0
        %647 = vmatpush1.bf16.msra.mxu0 0
        %648 = vmatprep.subr.bf16.mxu0 0
        %649 = vmatpush1.bf16.msra.mxu0 0
        %650 = vmatprep.subr.bf16.mxu0 0
        %651 = vmatpush1.bf16.msra.mxu0 %v634
        %652 = vmatprep.subr.bf16.mxu0 0
        %653 = vmatpush2.bf16.msra.mxu0 0
        %654 = vmatprep.subr.bf16.mxu0 0
        %655 = vmatpush2.bf16.msra.mxu0 0
        %656 = vmatprep.subr.bf16.mxu0 0
        %657 = vmatpush2.bf16.msra.mxu0 0
        %658 = vmatprep.subr.bf16.mxu0 0
        %659 = vmatpush2.bf16.msra.mxu0 0
        %660 = vmatprep.subr.bf16.mxu0 0
        %661 = vmatpush2.bf16.msra.mxu0 0
        %662 = vmatprep.subr.bf16.mxu0 0
        %663 = vmatpush2.bf16.msra.mxu0 0
        %664 = vmatprep.subr.bf16.mxu0 0
        %665 = vmatpush2.bf16.msra.mxu0 0
        %666 = vmatprep.subr.bf16.mxu0 0
        %667 = vmatpush2.bf16.msra.mxu0 0
        %668 = vmatprep.mubr.bf16.mxu0 0
        %669 = vmatmul.mubr.bf16.gmra.mxu0 %v631
        %v670 = vpop.f32.mrf.mxu0
        %v671 = vadd.f32 0.0, %v670
        %v672 = vpop.f32.mrf.mxu0
        %v673 = vpop.f32.mrf.mxu0
        %v674 = vpop.f32.mrf.mxu0
        %675 = vdwg.mxu0
        %v677 = vsel %vm454, %v514, 0
        %v680 = vsel %vm470, %v515, 0
        %682 = vmatprep.subr.bf16.mxu0 0
        %683 = vmatpush1.bf16.msra.mxu0 0
        %684 = vmatprep.subr.bf16.mxu0 0
        %685 = vmatpush1.bf16.msra.mxu0 0
        %686 = vmatprep.subr.bf16.mxu0 0
        %687 = vmatpush1.bf16.msra.mxu0 0
        %688 = vmatprep.subr.bf16.mxu0 0
        %689 = vmatpush1.bf16.msra.mxu0 0
        %690 = vmatprep.subr.bf16.mxu0 0
        %691 = vmatpush1.bf16.msra.mxu0 0
        %692 = vmatprep.subr.bf16.mxu0 0
        %693 = vmatpush1.bf16.msra.mxu0 0
        %694 = vmatprep.subr.bf16.mxu0 0
        %695 = vmatpush1.bf16.msra.mxu0 0
        %696 = vmatprep.subr.bf16.mxu0 0
        %697 = vmatpush1.bf16.msra.mxu0 %v680
        %698 = vmatprep.subr.bf16.mxu0 0
        %699 = vmatpush2.bf16.msra.mxu0 0
        %700 = vmatprep.subr.bf16.mxu0 0
        %701 = vmatpush2.bf16.msra.mxu0 0
        %702 = vmatprep.subr.bf16.mxu0 0
        %703 = vmatpush2.bf16.msra.mxu0 0
        %704 = vmatprep.subr.bf16.mxu0 0
        %705 = vmatpush2.bf16.msra.mxu0 0
        %706 = vmatprep.subr.bf16.mxu0 0
        %707 = vmatpush2.bf16.msra.mxu0 0
        %708 = vmatprep.subr.bf16.mxu0 0
        %709 = vmatpush2.bf16.msra.mxu0 0
        %710 = vmatprep.subr.bf16.mxu0 0
        %711 = vmatpush2.bf16.msra.mxu0 0
        %712 = vmatprep.subr.bf16.mxu0 0
        %713 = vmatpush2.bf16.msra.mxu0 0
        %714 = vmatprep.mubr.bf16.mxu0 0
        %715 = vmatmul.mubr.bf16.gmra.mxu0 %v677
        %v716 = vpop.f32.mrf.mxu0
        %v717 = vadd.f32 %v671, %v716
        %v718 = vpop.f32.mrf.mxu0
        %v719 = vpop.f32.mrf.mxu0
        %v720 = vpop.f32.mrf.mxu0
        %721 = vdwg.mxu0
        %722 = vrot.lane.b32.xlu0 %v402, 120
        %v723 = vpop.permute.xlu0 %722
        %724 = vrot.lane.b32.xlu0 %v402, 104
        %v725 = vpop.permute.xlu0 %724
        %v727 = vsel %vm407, %v723, 0
        %v730 = vsel %vm407, %v725, 0
        %732 = vmatprep.subr.bf16.mxu0 0
        %733 = vmatpush1.bf16.xpose.msra.mxu0 0
        %734 = vmatprep.subr.bf16.mxu0 0
        %735 = vmatpush1.bf16.xpose.msra.mxu0 0
        %736 = vmatprep.subr.bf16.mxu0 0
        %737 = vmatpush1.bf16.xpose.msra.mxu0 0
        %738 = vmatprep.subr.bf16.mxu0 0
        %739 = vmatpush1.bf16.xpose.msra.mxu0 0
        %740 = vmatprep.subr.bf16.mxu0 0
        %741 = vmatpush1.bf16.xpose.msra.mxu0 0
        %742 = vmatprep.subr.bf16.mxu0 0
        %743 = vmatpush1.bf16.xpose.msra.mxu0 0
        %744 = vmatprep.subr.bf16.mxu0 0
        %745 = vmatpush1.bf16.xpose.msra.mxu0 0
        %746 = vmatprep.subr.bf16.mxu0 0
        %747 = vmatpush1.bf16.xpose.msra.mxu0 %v730
        %748 = vmatprep.subr.bf16.mxu0 0
        %749 = vmatpush2.bf16.xpose.msra.mxu0 0
        %750 = vmatprep.subr.bf16.mxu0 0
        %751 = vmatpush2.bf16.xpose.msra.mxu0 0
        %752 = vmatprep.subr.bf16.mxu0 0
        %753 = vmatpush2.bf16.xpose.msra.mxu0 0
        %754 = vmatprep.subr.bf16.mxu0 0
        %755 = vmatpush2.bf16.xpose.msra.mxu0 0
        %756 = vmatprep.subr.bf16.mxu0 0
        %757 = vmatpush2.bf16.xpose.msra.mxu0 0
        %758 = vmatprep.subr.bf16.mxu0 0
        %759 = vmatpush2.bf16.xpose.msra.mxu0 0
        %760 = vmatprep.subr.bf16.mxu0 0
        %761 = vmatpush2.bf16.xpose.msra.mxu0 0
        %762 = vmatprep.subr.bf16.mxu0 0
        %763 = vmatpush2.bf16.xpose.msra.mxu0 0
        %764 = vmatprep.mubr.bf16.mxu0 0
        %765 = vmatmul.mubr.bf16.gmra.mxu0 %v727
        %v766 = vpop.f32.mrf.mxu0
        %v767 = vadd.f32 0.0, %v766
        %v768 = vpop.f32.mrf.mxu0
        %v769 = vpop.f32.mrf.mxu0
        %v770 = vpop.f32.mrf.mxu0
        %771 = vdwg.mxu0
        %v772 = vsel %vm454, %v767, -inf
        %773 = vmax.xlane.f32.xlu0 %v772
        %v774 = vpop.xlane.xlu0 %773
        %v775 = vsub.f32 %v767, %v774
        %v776 = vmul.f32 %v775, 1.442695
        %v777 = vpow.pop %v776
        %v778 = vsel %vm454, %v777, 0.0
        %779 = vadd.xlane.f32.xlu0 %v778
        %v780 = vpop.xlane.xlu0 %779
        %v781 = vrcp.pop %v780
        %v782 = vmul.f32 %v777, %v781
        %v783 = vpack.c.bf16 %v782, %v782
        %784 = vrot.lane.b32.xlu0 %v403, 112
        %v785 = vpop.permute.xlu0 %784
        %v787 = vsel %vm454, %v783, 0
        %v790 = vsel %vm470, %v785, 0
        %792 = vmatprep.subr.bf16.mxu0 0
        %793 = vmatpush1.bf16.msra.mxu0 0
        %794 = vmatprep.subr.bf16.mxu0 0
        %795 = vmatpush1.bf16.msra.mxu0 0
        %796 = vmatprep.subr.bf16.mxu0 0
        %797 = vmatpush1.bf16.msra.mxu0 0
        %798 = vmatprep.subr.bf16.mxu0 0
        %799 = vmatpush1.bf16.msra.mxu0 0
        %800 = vmatprep.subr.bf16.mxu0 0
        %801 = vmatpush1.bf16.msra.mxu0 0
        %802 = vmatprep.subr.bf16.mxu0 0
        %803 = vmatpush1.bf16.msra.mxu0 0
        %804 = vmatprep.subr.bf16.mxu0 0
        %805 = vmatpush1.bf16.msra.mxu0 0
        %806 = vmatprep.subr.bf16.mxu0 0
        %807 = vmatpush1.bf16.msra.mxu0 %v790
        %808 = vmatprep.subr.bf16.mxu0 0
        %809 = vmatpush2.bf16.msra.mxu0 0
        %810 = vmatprep.subr.bf16.mxu0 0
        %811 = vmatpush2.bf16.msra.mxu0 0
        %812 = vmatprep.subr.bf16.mxu0 0
        %813 = vmatpush2.bf16.msra.mxu0 0
        %814 = vmatprep.subr.bf16.mxu0 0
        %815 = vmatpush2.bf16.msra.mxu0 0
        %816 = vmatprep.subr.bf16.mxu0 0
        %817 = vmatpush2.bf16.msra.mxu0 0
        %818 = vmatprep.subr.bf16.mxu0 0
        %819 = vmatpush2.bf16.msra.mxu0 0
        %820 = vmatprep.subr.bf16.mxu0 0
        %821 = vmatpush2.bf16.msra.mxu0 0
        %822 = vmatprep.subr.bf16.mxu0 0
        %823 = vmatpush2.bf16.msra.mxu0 0
        %824 = vmatprep.mubr.bf16.mxu0 0
        %825 = vmatmul.mubr.bf16.gmra.mxu0 %v787
        %v826 = vpop.f32.mrf.mxu0
        %v827 = vadd.f32 0.0, %v826
        %v828 = vpop.f32.mrf.mxu0
        %v829 = vpop.f32.mrf.mxu0
        %v830 = vpop.f32.mrf.mxu0
        %831 = vdwg.mxu0
        %v832 = vpack.c.bf16 %v827, %v827
        %s833 = scalar_lea.vmem [#allocation8], 8
        %v834 = vld [vmem:[%s833] sm:$0xf]
        %v836 = vsel %vm454, %v832, 0
        %v839 = vsel %vm470, %v834, 0
        %841 = vmatprep.subr.bf16.mxu0 0
        %842 = vmatpush1.bf16.msra.mxu0 0
        %843 = vmatprep.subr.bf16.mxu0 0
        %844 = vmatpush1.bf16.msra.mxu0 0
        %845 = vmatprep.subr.bf16.mxu0 0
        %846 = vmatpush1.bf16.msra.mxu0 0
        %847 = vmatprep.subr.bf16.mxu0 0
        %848 = vmatpush1.bf16.msra.mxu0 0
        %849 = vmatprep.subr.bf16.mxu0 0
        %850 = vmatpush1.bf16.msra.mxu0 0
        %851 = vmatprep.subr.bf16.mxu0 0
        %852 = vmatpush1.bf16.msra.mxu0 0
        %853 = vmatprep.subr.bf16.mxu0 0
        %854 = vmatpush1.bf16.msra.mxu0 0
        %855 = vmatprep.subr.bf16.mxu0 0
        %856 = vmatpush1.bf16.msra.mxu0 %v839
        %857 = vmatprep.subr.bf16.mxu0 0
        %858 = vmatpush2.bf16.msra.mxu0 0
        %859 = vmatprep.subr.bf16.mxu0 0
        %860 = vmatpush2.bf16.msra.mxu0 0
        %861 = vmatprep.subr.bf16.mxu0 0
        %862 = vmatpush2.bf16.msra.mxu0 0
        %863 = vmatprep.subr.bf16.mxu0 0
        %864 = vmatpush2.bf16.msra.mxu0 0
        %865 = vmatprep.subr.bf16.mxu0 0
        %866 = vmatpush2.bf16.msra.mxu0 0
        %867 = vmatprep.subr.bf16.mxu0 0
        %868 = vmatpush2.bf16.msra.mxu0 0
        %869 = vmatprep.subr.bf16.mxu0 0
        %870 = vmatpush2.bf16.msra.mxu0 0
        %871 = vmatprep.subr.bf16.mxu0 0
        %872 = vmatpush2.bf16.msra.mxu0 0
        %873 = vmatprep.mubr.bf16.mxu0 0
        %874 = vmatmul.mubr.bf16.gmra.mxu0 %v836
        %v875 = vpop.f32.mrf.mxu0
        %v876 = vadd.f32 0.0, %v875
        %v877 = vpop.f32.mrf.mxu0
        %v878 = vpop.f32.mrf.mxu0
        %v879 = vpop.f32.mrf.mxu0
        %880 = vdwg.mxu0
        %v881 = vadd.f32 %v717, %v876
        %882 = vrot.lane.b32.xlu0 %v402, 116
        %v883 = vpop.permute.xlu0 %882
        %884 = vrot.lane.b32.xlu0 %v402, 100
        %v885 = vpop.permute.xlu0 %884
        %v887 = vsel %vm407, %v883, 0
        %v890 = vsel %vm407, %v885, 0
        %892 = vmatprep.subr.bf16.mxu0 0
        %893 = vmatpush1.bf16.xpose.msra.mxu0 0
        %894 = vmatprep.subr.bf16.mxu0 0
        %895 = vmatpush1.bf16.xpose.msra.mxu0 0
        %896 = vmatprep.subr.bf16.mxu0 0
        %897 = vmatpush1.bf16.xpose.msra.mxu0 0
        %898 = vmatprep.subr.bf16.mxu0 0
        %899 = vmatpush1.bf16.xpose.msra.mxu0 0
        %900 = vmatprep.subr.bf16.mxu0 0
        %901 = vmatpush1.bf16.xpose.msra.mxu0 0
        %902 = vmatprep.subr.bf16.mxu0 0
        %903 = vmatpush1.bf16.xpose.msra.mxu0 0
        %904 = vmatprep.subr.bf16.mxu0 0
        %905 = vmatpush1.bf16.xpose.msra.mxu0 0
        %906 = vmatprep.subr.bf16.mxu0 0
        %907 = vmatpush1.bf16.xpose.msra.mxu0 %v890
        %908 = vmatprep.subr.bf16.mxu0 0
        %909 = vmatpush2.bf16.xpose.msra.mxu0 0
        %910 = vmatprep.subr.bf16.mxu0 0
        %911 = vmatpush2.bf16.xpose.msra.mxu0 0
        %912 = vmatprep.subr.bf16.mxu0 0
        %913 = vmatpush2.bf16.xpose.msra.mxu0 0
        %914 = vmatprep.subr.bf16.mxu0 0
        %915 = vmatpush2.bf16.xpose.msra.mxu0 0
        %916 = vmatprep.subr.bf16.mxu0 0
        %917 = vmatpush2.bf16.xpose.msra.mxu0 0
        %918 = vmatprep.subr.bf16.mxu0 0
        %919 = vmatpush2.bf16.xpose.msra.mxu0 0
        %920 = vmatprep.subr.bf16.mxu0 0
        %921 = vmatpush2.bf16.xpose.msra.mxu0 0
        %922 = vmatprep.subr.bf16.mxu0 0
        %923 = vmatpush2.bf16.xpose.msra.mxu0 0
        %924 = vmatprep.mubr.bf16.mxu0 0
        %925 = vmatmul.mubr.bf16.gmra.mxu0 %v887
        %v926 = vpop.f32.mrf.mxu0
        %v927 = vadd.f32 0.0, %v926
        %v928 = vpop.f32.mrf.mxu0
        %v929 = vpop.f32.mrf.mxu0
        %v930 = vpop.f32.mrf.mxu0
        %931 = vdwg.mxu0
        %v932 = vsel %vm454, %v927, -inf
        %933 = vmax.xlane.f32.xlu0 %v932
        %v934 = vpop.xlane.xlu0 %933
        %v935 = vsub.f32 %v927, %v934
        %v936 = vmul.f32 %v935, 1.442695
        %v937 = vpow.pop %v936
        %v938 = vsel %vm454, %v937, 0.0
        %939 = vadd.xlane.f32.xlu0 %v938
        %v940 = vpop.xlane.xlu0 %939
        %v941 = vrcp.pop %v940
        %v942 = vmul.f32 %v937, %v941
        %v943 = vpack.c.bf16 %v942, %v942
        %944 = vrot.lane.b32.xlu0 %v403, 104
        %v945 = vpop.permute.xlu0 %944
        %v947 = vsel %vm454, %v943, 0
        %v950 = vsel %vm470, %v945, 0
        %952 = vmatprep.subr.bf16.mxu0 0
        %953 = vmatpush1.bf16.msra.mxu0 0
        %954 = vmatprep.subr.bf16.mxu0 0
        %955 = vmatpush1.bf16.msra.mxu0 0
        %956 = vmatprep.subr.bf16.mxu0 0
        %957 = vmatpush1.bf16.msra.mxu0 0
        %958 = vmatprep.subr.bf16.mxu0 0
        %959 = vmatpush1.bf16.msra.mxu0 0
        %960 = vmatprep.subr.bf16.mxu0 0
        %961 = vmatpush1.bf16.msra.mxu0 0
        %962 = vmatprep.subr.bf16.mxu0 0
        %963 = vmatpush1.bf16.msra.mxu0 0
        %964 = vmatprep.subr.bf16.mxu0 0
        %965 = vmatpush1.bf16.msra.mxu0 0
        %966 = vmatprep.subr.bf16.mxu0 0
        %967 = vmatpush1.bf16.msra.mxu0 %v950
        %968 = vmatprep.subr.bf16.mxu0 0
        %969 = vmatpush2.bf16.msra.mxu0 0
        %970 = vmatprep.subr.bf16.mxu0 0
        %971 = vmatpush2.bf16.msra.mxu0 0
        %972 = vmatprep.subr.bf16.mxu0 0
        %973 = vmatpush2.bf16.msra.mxu0 0
        %974 = vmatprep.subr.bf16.mxu0 0
        %975 = vmatpush2.bf16.msra.mxu0 0
        %976 = vmatprep.subr.bf16.mxu0 0
        %977 = vmatpush2.bf16.msra.mxu0 0
        %978 = vmatprep.subr.bf16.mxu0 0
        %979 = vmatpush2.bf16.msra.mxu0 0
        %980 = vmatprep.subr.bf16.mxu0 0
        %981 = vmatpush2.bf16.msra.mxu0 0
        %982 = vmatprep.subr.bf16.mxu0 0
        %983 = vmatpush2.bf16.msra.mxu0 0
        %984 = vmatprep.mubr.bf16.mxu0 0
        %985 = vmatmul.mubr.bf16.gmra.mxu0 %v947
        %v986 = vpop.f32.mrf.mxu0
        %v987 = vadd.f32 0.0, %v986
        %v988 = vpop.f32.mrf.mxu0
        %v989 = vpop.f32.mrf.mxu0
        %v990 = vpop.f32.mrf.mxu0
        %991 = vdwg.mxu0
        %v992 = vpack.c.bf16 %v987, %v987
        %s993 = scalar_lea.vmem [#allocation8], 12
        %v994 = vld [vmem:[%s993] sm:$0xf]
        %v996 = vsel %vm454, %v992, 0
        %v999 = vsel %vm470, %v994, 0
        %1001 = vmatprep.subr.bf16.mxu0 0
        %1002 = vmatpush1.bf16.msra.mxu0 0
        %1003 = vmatprep.subr.bf16.mxu0 0
        %1004 = vmatpush1.bf16.msra.mxu0 0
        %1005 = vmatprep.subr.bf16.mxu0 0
        %1006 = vmatpush1.bf16.msra.mxu0 0
        %1007 = vmatprep.subr.bf16.mxu0 0
        %1008 = vmatpush1.bf16.msra.mxu0 0
        %1009 = vmatprep.subr.bf16.mxu0 0
        %1010 = vmatpush1.bf16.msra.mxu0 0
        %1011 = vmatprep.subr.bf16.mxu0 0
        %1012 = vmatpush1.bf16.msra.mxu0 0
        %1013 = vmatprep.subr.bf16.mxu0 0
        %1014 = vmatpush1.bf16.msra.mxu0 0
        %1015 = vmatprep.subr.bf16.mxu0 0
        %1016 = vmatpush1.bf16.msra.mxu0 %v999
        %1017 = vmatprep.subr.bf16.mxu0 0
        %1018 = vmatpush2.bf16.msra.mxu0 0
        %1019 = vmatprep.subr.bf16.mxu0 0
        %1020 = vmatpush2.bf16.msra.mxu0 0
        %1021 = vmatprep.subr.bf16.mxu0 0
        %1022 = vmatpush2.bf16.msra.mxu0 0
        %1023 = vmatprep.subr.bf16.mxu0 0
        %1024 = vmatpush2.bf16.msra.mxu0 0
        %1025 = vmatprep.subr.bf16.mxu0 0
        %1026 = vmatpush2.bf16.msra.mxu0 0
        %1027 = vmatprep.subr.bf16.mxu0 0
        %1028 = vmatpush2.bf16.msra.mxu0 0
        %1029 = vmatprep.subr.bf16.mxu0 0
        %1030 = vmatpush2.bf16.msra.mxu0 0
        %1031 = vmatprep.subr.bf16.mxu0 0
        %1032 = vmatpush2.bf16.msra.mxu0 0
        %1033 = vmatprep.mubr.bf16.mxu0 0
        %1034 = vmatmul.mubr.bf16.gmra.mxu0 %v996
        %v1035 = vpop.f32.mrf.mxu0
        %v1036 = vadd.f32 0.0, %v1035
        %v1037 = vpop.f32.mrf.mxu0
        %v1038 = vpop.f32.mrf.mxu0
        %v1039 = vpop.f32.mrf.mxu0
        %1040 = vdwg.mxu0
        %v1041 = vadd.f32 %v881, %v1036
        %v1042 = vld [vmem:[%s4] sm:$0x1]
        %v1044 = vlaneseq
        %v1045 = vshrl.u32 %v1044, 7
        %v1046 = vsub.s32 0, %v1045
        %v1047 = vrot.slane %v1042, %v1046
        %v1049 = vadd.f32 %v1041, %v1047
        %1050 = vst.msk [vmem:[%s283] sm:$0xff] %vm302, %v1049
        %s1051 = sand.u32 %s142, 1
        %s1052 = scalar_lea.sflag [#allocation4], %s1051
        %s1053 = sand.u32 %s142, 1
        %s1054 = smul.addr %s1053, 8
        %s1055 = scalar_lea.vmem [#allocation10], %s1054
        // Predicated region
        $region57: #{tpu_custom_call.1} parent=39 // pred_check
          %p1056 = pneg %p152
        $region58: #{tpu_custom_call.1} parent=39 // pred_check_branch
          %1058 = sbr.rel (%p1056) target = $region60
        $region59: #{tpu_custom_call.1} parent=39 // pred_region
          %s1060 = ssub.s32 128, 128
          %1061 = vsyncadd %s1052, %s1060
          %s1062 = smul.addr %s24, 128
          %s1063 = scalar_lea.hbm %s5, %s1062
          %s1065 = sshll.u32 %s1055, 4
          %s1066 = int_to_ptr.vmem [resolvable:$true] %s1065
          %1068 = dma.vmem_to_hbm [thread:$0]  %s1066, 128, %s1063, %s1052
        $region60: #{tpu_custom_call.1} parent=39 // pred_fallthru
          _
      $region40: #{tpu_custom_call.1} parent=5 // pred_fallthru
        _
      %p1069 = scmp.le.s32.totalorder 2, %s19
      // Predicated region
      $region61: #{tpu_custom_call.1} parent=5 // pred_check
        %p1070 = pneg %p1069
      $region62: #{tpu_custom_call.1} parent=5 // pred_check_branch
        %1072 = sbr.rel (%p1070) target = $region64
      $region63: #{tpu_custom_call.1} parent=5 // pred_region
        %s1073 = ssub.s32 %s19, 2
        // Predicated region
        $region65: #{tpu_custom_call.1} parent=63 // pred_check
          %p1074 = pneg %p158
        $region66: #{tpu_custom_call.1} parent=63 // pred_check_branch
          %1076 = sbr.rel (%p1074) target = $region68
        $region67: #{tpu_custom_call.1} parent=63 // pred_region
          %s1077 = sand.u32 %s143, 1
          %s1078 = scalar_lea.sflag [#allocation4], %s1077
          %s1079 = sand.u32 %s143, 1
          %s1080 = smul.addr %s1079, 8
          %s1081 = scalar_lea.vmem [#allocation10], %s1080
          %1082 = dma.done %s1078, 128
        $region68: #{tpu_custom_call.1} parent=63 // pred_fallthru
          _
      $region64: #{tpu_custom_call.1} parent=5 // pred_fallthru
        _
    $region6: #{tpu_custom_call.1} parent=1 // loop_footer
      %s23 = sadd.s32 1, %s19
    $region7: #{tpu_custom_call.1} parent=1 // loop_footer_branch
      %18 = sbr.rel target = $region3
    $region8: #{tpu_custom_call.1} parent=1 // loop_exit
      _
    %1083 = vsyncpa [#allocation3], 1
    %s1084 = scalar_lea.sflag [#allocation3], 1
    %1085 = vsyncpa %s1084, 1
    %1086 = vsyncpa [#allocation6], 1
    %1087 = vsyncpa [#allocation9], 1
    %1088 = vsyncpa [#allocation4], 1
    %s1089 = scalar_lea.sflag [#allocation4], 1
    %1090 = vsyncpa %s1089, 1

</llo_original>
